<compile_context>
chip_gen: v7x
topology: tpu7x:2x2x1
jax: 0.10.0
libtpu: 0.0.40
codegen_flags: <defaults>
</compile_context>

<pallas_src>
import functools

import numpy as np
import jax
import jax.numpy as jnp
from jax import lax
from jax.experimental import pallas as pl
from jax.experimental.pallas import tpu as pltpu  # noqa: F401  (TPU backend assumed)

NUM_HEADING_BIN = 4
NUM_SIZE_CLUSTER = 1

# Deterministic synthetic mean-size table (NUM_SIZE_CLUSTER, 3) — stands in for
# the module-level `g_mean_size_arr` (not loaded from any checkpoint).
G_MEAN_SIZE_ARR = np.array([[3.9, 1.6, 1.56]], dtype=np.float32)

# ---- packed feature-slab column offsets (static) ----
_C = 0        # center (3)
_CL = 3       # center_label (3)
_S1 = 6       # stage1_center (3)
_HS = 9       # heading_scores (NUM_HEADING_BIN)
_HRN = 13     # heading_residual_normalized (NUM_HEADING_BIN)
_HOH = 17     # heading one-hot (NUM_HEADING_BIN)
_HRL = 21     # heading_residual_label (1)
_SS = 22      # size_scores (NUM_SIZE_CLUSTER == 1)
_SOH = 23     # size one-hot (1)
_SRN = 24     # size_residual_normalized (3)
_SR = 27      # size_residual (3)
_SRL = 30     # size_residual_label (3)
_CPRED = 33   # sum_h onehot * cos(pred heading_h) (1)
_SPRED = 34   # sum_h onehot * sin(pred heading_h) (1)
_CGT = 35     # cos(one-hot-selected gt heading) (1)
_SGT = 36     # sin(one-hot-selected gt heading) (1)
_F = 37
FEAT_PAD = 128      # lane-dense input slab (one vreg per 8 batch rows)
OUT_LANES = 128     # lane-dense output vector (single unmasked store)


def _huber_mean(err, delta):
    abs_e = jnp.abs(err)
    quad = jnp.minimum(abs_e, delta)
    lin = abs_e - quad
    return jnp.mean(0.5 * quad * quad + delta * lin, keepdims=True)  # (1, 1)


def frustum_loss_kernel(
    seg_ref,     # (3, bs, N) f32: [logit_c0, logit_c1, mask_label]
    feat_ref,    # (bs, FEAT_PAD) f32 packed per-batch feature slab
    out_ref,     # (1, OUT_LANES) f32 fused output
    *, corner_loss_weight, box_loss_weight, mean_l, mean_w, mean_h,
):
    f32 = jnp.float32
    feat = feat_ref[...]

    # ---- 1. instance segmentation: 2-class log-softmax + NLL ----
    l0 = seg_ref[0]
    l1 = seg_ref[1]
    lbl = seg_ref[2]                        # 0.0 / 1.0
    m = jnp.maximum(l0, l1)
    lse = m + jnp.log(jnp.exp(l0 - m) + jnp.exp(l1 - m))
    picked = jnp.where(lbl == 0.0, l0 - lse, l1 - lse)
    mask_loss = -jnp.mean(picked, keepdims=True)                     # (1, 1)

    # ---- 2. center losses ----
    center = feat[:, _C:_C + 3]
    center_label = feat[:, _CL:_CL + 3]
    stage1 = feat[:, _S1:_S1 + 3]
    cd = center - center_label
    center_loss = _huber_mean(jnp.sqrt(jnp.sum(cd * cd, axis=1, keepdims=True)), 2.0)
    sd = center - stage1
    stage1_center_loss = _huber_mean(jnp.sqrt(jnp.sum(sd * sd, axis=1, keepdims=True)), 1.0)

    # ---- 3. heading class + residual losses ----
    hs = feat[:, _HS:_HS + NUM_HEADING_BIN]
    h_onehot = feat[:, _HOH:_HOH + NUM_HEADING_BIN]
    mh = jnp.max(hs, axis=1, keepdims=True)
    lse_h = mh + jnp.log(jnp.sum(jnp.exp(hs - mh), axis=1, keepdims=True))
    heading_class_loss = -jnp.mean(
        jnp.sum((hs - lse_h) * h_onehot, axis=1, keepdims=True), keepdims=True)

    hrl = feat[:, _HRL:_HRL + 1]
    hrn = feat[:, _HRN:_HRN + NUM_HEADING_BIN]
    hrn_label = hrl / (np.pi / NUM_HEADING_BIN)
    hrn_dist = jnp.sum(hrn * h_onehot, axis=1, keepdims=True)
    hrn_loss = _huber_mean(hrn_dist - hrn_label, 1.0)

    # ---- 4. size class + residual losses (NUM_SIZE_CLUSTER == 1) ----
    ss = feat[:, _SS:_SS + NUM_SIZE_CLUSTER]
    s_onehot = feat[:, _SOH:_SOH + 1]
    ms_ = jnp.max(ss, axis=1, keepdims=True)
    lse_s = ms_ + jnp.log(jnp.sum(jnp.exp(ss - ms_), axis=1, keepdims=True))
    size_class_loss = -jnp.mean(
        jnp.sum((ss - lse_s) * s_onehot, axis=1, keepdims=True), keepdims=True)

    srn = feat[:, _SRN:_SRN + 3]
    srl = feat[:, _SRL:_SRL + 3]
    pred_srn = s_onehot * srn
    # Guard /0 when size_class_label is out of range (the reference would raise);
    # for valid labels s_onehot == 1 and this is exact.
    safe_oh = jnp.where(s_onehot > 0.0, s_onehot, 1.0)
    d0 = srl[:, 0:1] / (safe_oh * mean_l) - pred_srn[:, 0:1]
    d1 = srl[:, 1:2] / (safe_oh * mean_w) - pred_srn[:, 1:2]
    d2 = srl[:, 2:3] / (safe_oh * mean_h) - pred_srn[:, 2:3]
    size_norm_dist = jnp.sqrt(d0 * d0 + d1 * d1 + d2 * d2)
    srn_loss = _huber_mean(size_norm_dist, 1.0)

    # ---- 5. corner loss ----
    # Corner sign template * 0.5 built from a lane iota (no dense constant input).
    idx = lax.broadcasted_iota(jnp.int32, (1, 8), 1)
    m4 = idx % 4
    sx = jnp.where(m4 < 2, 0.5, -0.5).astype(f32)                    # x: +-l/2
    sy = jnp.where(idx < 4, 0.5, -0.5).astype(f32)                   # y: +-h/2
    sz = jnp.where((m4 == 0) | (m4 == 3), 0.5, -0.5).astype(f32)     # z: +-w/2

    sr = feat[:, _SR:_SR + 3]
    # get_box3d_corners adds size_residual twice (mean + 2*residual) — reproduced.
    l_p = mean_l + 2.0 * sr[:, 0:1]
    w_p = mean_w + 2.0 * sr[:, 1:2]
    h_p = mean_h + 2.0 * sr[:, 2:3]
    xc = l_p * sx
    yc = h_p * sy
    zc = w_p * sz                                                    # (bs, 8)
    cx, cy, cz = center[:, 0:1], center[:, 1:2], center[:, 2:3]

    c_sel = feat[:, _CPRED:_CPRED + 1]
    s_sel = feat[:, _SPRED:_SPRED + 1]
    hsum = jnp.sum(h_onehot, axis=1, keepdims=True)                  # 1 for valid labels
    Xp = s_onehot * (c_sel * xc + s_sel * zc + hsum * cx)
    Yp = s_onehot * (hsum * (yc + cy))
    Zp = s_onehot * (-s_sel * xc + c_sel * zc + hsum * cz)

    # Ground-truth box corners.
    # TODO(synk): the reference computes `heading_label_np.max(axis=1)` on a 1-D
    # array (would raise in numpy); we use the one-hot-selected heading directly.
    l_g = s_onehot * (mean_l + srl[:, 0:1])
    w_g = s_onehot * (mean_w + srl[:, 1:2])
    h_g = s_onehot * (mean_h + srl[:, 2:3])
    xcg = l_g * sx
    ycg = h_g * sy
    zcg = w_g * sz
    clx, cly, clz = center_label[:, 0:1], center_label[:, 1:2], center_label[:, 2:3]

    cg = feat[:, _CGT:_CGT + 1]
    sg = feat[:, _SGT:_SGT + 1]
    Xg = cg * xcg + sg * zcg + clx
    Yg = ycg + cly
    Zg = -sg * xcg + cg * zcg + clz
    # flipped gt box: cos(x+pi) = -cos(x), sin(x+pi) = -sin(x)
    Xf = -cg * xcg - sg * zcg + clx
    Zf = sg * xcg - cg * zcg + clz

    dxg, dyg, dzg = Xp - Xg, Yp - Yg, Zp - Zg
    dxf, dzf = Xp - Xf, Zp - Zf
    d_gt = jnp.sqrt(dxg * dxg + dyg * dyg + dzg * dzg)
    d_flip = jnp.sqrt(dxf * dxf + dyg * dyg + dzf * dzf)             # Yf == Yg
    corners_loss = _huber_mean(jnp.minimum(d_gt, d_flip), 1.0)

    total_loss = mask_loss + box_loss_weight * (
        center_loss + heading_class_loss + size_class_loss
        + hrn_loss * 20.0 + srn_loss * 20.0 + stage1_center_loss
        + corner_loss_weight * corners_loss)

    # ---- fused lane-dense output with final dict scaling folded in ----
    vals = (
        total_loss,
        box_loss_weight * center_loss,             # dict 'mask_loss' (reference quirk)
        box_loss_weight * heading_class_loss,
        box_loss_weight * size_class_loss,
        box_loss_weight * hrn_loss * 20.0,
        box_loss_weight * srn_loss * 20.0,
        box_loss_weight * srn_loss * 20.0,         # dict 'stage1_center_loss' (quirk)
        box_loss_weight * corners_loss * corner_loss_weight,
    )
    lane = lax.broadcasted_iota(jnp.int32, (1, OUT_LANES), 1)
    out = jnp.zeros((1, OUT_LANES), f32)
    for i, v in enumerate(vals):
        out = out + jnp.where(lane == i, v, 0.0)
    out_ref[...] = out


def frustum_pointnet_loss(logits, mask_label, center, center_label, stage1_center,
                          heading_scores, heading_residual_normalized, heading_residual,
                          heading_class_label, heading_residual_label,
                          size_scores, size_residual_normalized, size_residual,
                          size_class_label, size_residual_label,
                          corner_loss_weight=10.0, box_loss_weight=1.0):
    f32 = jnp.float32
    bs = logits.shape[0]

    # Segmentation stack: class-first logits + mask label as a 3rd channel.
    logits_cf = jnp.transpose(logits.astype(f32), (2, 0, 1))            # (2, bs, N)
    seg = jnp.concatenate([logits_cf, mask_label.astype(f32)[None]], 0)  # (3, bs, N)

    hcls = heading_class_label.reshape(bs).astype(jnp.int32)
    scls = size_class_label.reshape(bs).astype(jnp.int32)
    hrl = heading_residual_label.reshape(bs, 1).astype(f32)
    h_onehot = jax.nn.one_hot(hcls, NUM_HEADING_BIN, dtype=f32)         # (bs, NH)
    s_onehot = jax.nn.one_hot(scls, NUM_SIZE_CLUSTER, dtype=f32)        # (bs, 1)

    # Tiny glue: heading bin centers + one-hot-selected trig (avoids sin/cos
    # inside Mosaic and removes per-bin masked reductions from the kernel).
    hbc = (2.0 * np.pi / NUM_HEADING_BIN) * jnp.arange(NUM_HEADING_BIN, dtype=f32)
    ang_pred = heading_residual.astype(f32) + hbc[None, :]
    c_pred_sel = jnp.sum(h_onehot * jnp.cos(ang_pred), axis=1, keepdims=True)
    s_pred_sel = jnp.sum(h_onehot * jnp.sin(ang_pred), axis=1, keepdims=True)
    heading_label_sel = jnp.sum(h_onehot * (hrl + hbc[None, :]), axis=1, keepdims=True)
    c_gt_sel = jnp.cos(heading_label_sel)
    s_gt_sel = jnp.sin(heading_label_sel)

    feat = jnp.concatenate([
        center.astype(f32),
        center_label.astype(f32),
        stage1_center.astype(f32),
        heading_scores.astype(f32),
        heading_residual_normalized.astype(f32),
        h_onehot,
        hrl,
        size_scores.astype(f32).reshape(bs, NUM_SIZE_CLUSTER),
        s_onehot,
        size_residual_normalized.astype(f32).reshape(bs, 3),
        size_residual.astype(f32).reshape(bs, 3),
        size_residual_label.astype(f32).reshape(bs, 3),
        c_pred_sel, s_pred_sel, c_gt_sel, s_gt_sel,
    ], axis=1)                                                           # (bs, _F)
    feat = jnp.pad(feat, ((0, 0), (0, FEAT_PAD - feat.shape[1])))        # lane-dense

    kernel = functools.partial(
        frustum_loss_kernel,
        corner_loss_weight=float(corner_loss_weight),
        box_loss_weight=float(box_loss_weight),
        mean_l=float(G_MEAN_SIZE_ARR[0, 0]),
        mean_w=float(G_MEAN_SIZE_ARR[0, 1]),
        mean_h=float(G_MEAN_SIZE_ARR[0, 2]),
    )

    out = pl.pallas_call(
        kernel,
        out_shape=jax.ShapeDtypeStruct((1, OUT_LANES), f32),
    )(seg, feat)

    row = out[0]
    losses = {
        'total_loss': row[0],
        # NOTE: the reference dict literal assigns 'mask_loss' twice; the second
        # assignment (box_loss_weight * center_loss) wins — reproduced here.
        'mask_loss': row[1],
        'heading_class_loss': row[2],
        'size_class_loss': row[3],
        'heading_residual_normalized_loss': row[4],
        'size_residual_normalized_loss': row[5],
        # reference quirk: this key is also box * size_residual_normalized_loss * 20
        'stage1_center_loss': row[6],
        'corners_loss': row[7],
    }
    return losses


if __name__ == "__main__":
    key = jax.random.PRNGKey(0)
    bs, n_pts = 8, 128
    ks = jax.random.split(key, 12)

    logits = jax.random.normal(ks[0], (bs, n_pts, 2), jnp.float32)
    mask_label = (jax.random.uniform(ks[1], (bs, n_pts)) > 0.5).astype(jnp.int32)
    center = jax.random.normal(ks[2], (bs, 3), jnp.float32)
    center_label = center + 0.1 * jax.random.normal(ks[3], (bs, 3), jnp.float32)
    stage1_center = center + 0.1 * jax.random.normal(ks[4], (bs, 3), jnp.float32)
    heading_scores = jax.random.normal(ks[5], (bs, NUM_HEADING_BIN), jnp.float32)
    heading_residual_normalized = 0.1 * jax.random.normal(ks[6], (bs, NUM_HEADING_BIN), jnp.float32)
    heading_residual = heading_residual_normalized * (np.pi / NUM_HEADING_BIN)
    heading_class_label = jax.random.randint(ks[7], (bs,), 0, NUM_HEADING_BIN)
    heading_residual_label = 0.1 * jax.random.normal(ks[8], (bs,), jnp.float32)
    size_scores = jax.random.normal(ks[9], (bs, NUM_SIZE_CLUSTER), jnp.float32)
    size_residual_normalized = 0.1 * jax.random.normal(ks[10], (bs, NUM_SIZE_CLUSTER, 3), jnp.float32)
    size_residual = size_residual_normalized * jnp.asarray(G_MEAN_SIZE_ARR)[None]
    size_class_label = jnp.zeros((bs,), jnp.int32)
    size_residual_label = 0.1 * jax.random.normal(ks[11], (bs, 3), jnp.float32)

    losses = frustum_pointnet_loss(
        logits, mask_label, center, center_label, stage1_center,
        heading_scores, heading_residual_normalized, heading_residual,
        heading_class_label, heading_residual_label,
        size_scores, size_residual_normalized, size_residual,
        size_class_label, size_residual_label)

    jax.block_until_ready(losses)
    print("KERNEL_OK")
</pallas_src>

<mosaic_0001>
module attributes {stable_mosaic.version = 11 : i64} {
  func.func @frustum_loss_kernel(%arg0: memref<3x8x128xf32, #tpu.memory_space<vmem>>, %arg1: memref<8x128xf32, #tpu.memory_space<vmem>>, %arg2: memref<1x128xf32, #tpu.memory_space<vmem>>) attributes {dimension_semantics = [], scalar_prefetch = 0 : i64, scratch_operands = 0 : i64, tpu.core_type = #tpu.core_type<tc>} {
    %c0 = arith.constant 0 : index
    %c0_0 = arith.constant 0 : index
    %0 = vector.load %arg1[%c0, %c0_0] : memref<8x128xf32, #tpu.memory_space<vmem>>, vector<8x128xf32>
    %c0_1 = arith.constant 0 : index
    %c0_2 = arith.constant 0 : index
    %c0_3 = arith.constant 0 : index
    %1 = vector.load %arg0[%c0_1, %c0_2, %c0_3] : memref<3x8x128xf32, #tpu.memory_space<vmem>>, vector<1x8x128xf32>
    %2 = vector.shape_cast %1 : vector<1x8x128xf32> to vector<8x128xf32>
    %c1 = arith.constant 1 : index
    %c0_4 = arith.constant 0 : index
    %c0_5 = arith.constant 0 : index
    %3 = vector.load %arg0[%c1, %c0_4, %c0_5] : memref<3x8x128xf32, #tpu.memory_space<vmem>>, vector<1x8x128xf32>
    %4 = vector.shape_cast %3 : vector<1x8x128xf32> to vector<8x128xf32>
    %c2 = arith.constant 2 : index
    %c0_6 = arith.constant 0 : index
    %c0_7 = arith.constant 0 : index
    %5 = vector.load %arg0[%c2, %c0_6, %c0_7] : memref<3x8x128xf32, #tpu.memory_space<vmem>>, vector<1x8x128xf32>
    %6 = vector.shape_cast %5 : vector<1x8x128xf32> to vector<8x128xf32>
    %7 = arith.maximumf %2, %4 : vector<8x128xf32>
    %8 = arith.subf %2, %7 : vector<8x128xf32>
    %9 = math.exp %8 : vector<8x128xf32>
    %10 = arith.subf %4, %7 : vector<8x128xf32>
    %11 = math.exp %10 : vector<8x128xf32>
    %12 = arith.addf %9, %11 : vector<8x128xf32>
    %13 = math.log %12 : vector<8x128xf32>
    %14 = arith.addf %7, %13 : vector<8x128xf32>
    %cst = arith.constant 0.000000e+00 : f32
    %15 = vector.broadcast %cst : f32 to vector<8x128xf32>
    %16 = arith.cmpf oeq, %6, %15 : vector<8x128xf32>
    %17 = arith.subf %2, %14 : vector<8x128xf32>
    %18 = arith.subf %4, %14 : vector<8x128xf32>
    %19 = arith.select %16, %17, %18 : vector<8x128xi1>, vector<8x128xf32>
    %20 = vector.shape_cast %19 : vector<8x128xf32> to vector<1x8x128xf32>
    %cst_8 = arith.constant dense<0.000000e+00> : vector<1xf32>
    %21 = vector.multi_reduction <add>, %20, %cst_8 [1, 2] : vector<1x8x128xf32> to vector<1xf32>
    %22 = vector.shape_cast %21 : vector<1xf32> to vector<1x1x1xf32>
    %23 = vector.extract %22[0, 0, 0] : f32 from vector<1x1x1xf32>
    %24 = vector.broadcast %23 : f32 to vector<1x1xf32>
    %cst_9 = arith.constant 1.024000e+03 : f32
    %25 = vector.broadcast %cst_9 : f32 to vector<1x1xf32>
    %26 = arith.divf %24, %25 : vector<1x1xf32>
    %cst_10 = arith.constant 0.000000e+00 : f32
    %27 = vector.broadcast %cst_10 : f32 to vector<1x1xf32>
    %28 = arith.subf %27, %26 : vector<1x1xf32>
    %29 = vector.extract_strided_slice %0 {offsets = [0, 0], sizes = [8, 3], strides = [1, 1]} : vector<8x128xf32> to vector<8x3xf32>
    %30 = vector.extract_strided_slice %0 {offsets = [0, 3], sizes = [8, 3], strides = [1, 1]} : vector<8x128xf32> to vector<8x3xf32>
    %31 = vector.extract_strided_slice %0 {offsets = [0, 6], sizes = [8, 3], strides = [1, 1]} : vector<8x128xf32> to vector<8x3xf32>
    %32 = arith.subf %29, %30 : vector<8x3xf32>
    %33 = arith.mulf %32, %32 : vector<8x3xf32>
    %cst_11 = arith.constant dense<0.000000e+00> : vector<8xf32>
    %34 = vector.multi_reduction <add>, %33, %cst_11 [1] : vector<8x3xf32> to vector<8xf32>
    %35 = vector.shape_cast %34 : vector<8xf32> to vector<8x1xf32>
    %36 = math.sqrt %35 : vector<8x1xf32>
    %37 = math.absf %36 : vector<8x1xf32>
    %cst_12 = arith.constant 2.000000e+00 : f32
    %38 = vector.broadcast %cst_12 : f32 to vector<8x1xf32>
    %39 = arith.minimumf %37, %38 : vector<8x1xf32>
    %40 = arith.subf %37, %39 : vector<8x1xf32>
    %cst_13 = arith.constant 5.000000e-01 : f32
    %41 = vector.broadcast %cst_13 : f32 to vector<8x1xf32>
    %42 = arith.mulf %41, %39 : vector<8x1xf32>
    %43 = arith.mulf %42, %39 : vector<8x1xf32>
    %cst_14 = arith.constant 2.000000e+00 : f32
    %44 = vector.broadcast %cst_14 : f32 to vector<8x1xf32>
    %45 = arith.mulf %44, %40 : vector<8x1xf32>
    %46 = arith.addf %43, %45 : vector<8x1xf32>
    %47 = vector.shape_cast %46 : vector<8x1xf32> to vector<1x8x1xf32>
    %cst_15 = arith.constant dense<0.000000e+00> : vector<1xf32>
    %48 = vector.multi_reduction <add>, %47, %cst_15 [1, 2] : vector<1x8x1xf32> to vector<1xf32>
    %49 = vector.shape_cast %48 : vector<1xf32> to vector<1x1x1xf32>
    %50 = vector.extract %49[0, 0, 0] : f32 from vector<1x1x1xf32>
    %51 = vector.broadcast %50 : f32 to vector<1x1xf32>
    %cst_16 = arith.constant 8.000000e+00 : f32
    %52 = vector.broadcast %cst_16 : f32 to vector<1x1xf32>
    %53 = arith.divf %51, %52 : vector<1x1xf32>
    %54 = arith.subf %29, %31 : vector<8x3xf32>
    %55 = arith.mulf %54, %54 : vector<8x3xf32>
    %cst_17 = arith.constant dense<0.000000e+00> : vector<8xf32>
    %56 = vector.multi_reduction <add>, %55, %cst_17 [1] : vector<8x3xf32> to vector<8xf32>
    %57 = vector.shape_cast %56 : vector<8xf32> to vector<8x1xf32>
    %58 = math.sqrt %57 : vector<8x1xf32>
    %59 = math.absf %58 : vector<8x1xf32>
    %cst_18 = arith.constant 1.000000e+00 : f32
    %60 = vector.broadcast %cst_18 : f32 to vector<8x1xf32>
    %61 = arith.minimumf %59, %60 : vector<8x1xf32>
    %62 = arith.subf %59, %61 : vector<8x1xf32>
    %cst_19 = arith.constant 5.000000e-01 : f32
    %63 = vector.broadcast %cst_19 : f32 to vector<8x1xf32>
    %64 = arith.mulf %63, %61 : vector<8x1xf32>
    %65 = arith.mulf %64, %61 : vector<8x1xf32>
    %cst_20 = arith.constant 1.000000e+00 : f32
    %66 = vector.broadcast %cst_20 : f32 to vector<8x1xf32>
    %67 = arith.mulf %66, %62 : vector<8x1xf32>
    %68 = arith.addf %65, %67 : vector<8x1xf32>
    %69 = vector.shape_cast %68 : vector<8x1xf32> to vector<1x8x1xf32>
    %cst_21 = arith.constant dense<0.000000e+00> : vector<1xf32>
    %70 = vector.multi_reduction <add>, %69, %cst_21 [1, 2] : vector<1x8x1xf32> to vector<1xf32>
    %71 = vector.shape_cast %70 : vector<1xf32> to vector<1x1x1xf32>
    %72 = vector.extract %71[0, 0, 0] : f32 from vector<1x1x1xf32>
    %73 = vector.broadcast %72 : f32 to vector<1x1xf32>
    %cst_22 = arith.constant 8.000000e+00 : f32
    %74 = vector.broadcast %cst_22 : f32 to vector<1x1xf32>
    %75 = arith.divf %73, %74 : vector<1x1xf32>
    %76 = vector.extract_strided_slice %0 {offsets = [0, 9], sizes = [8, 4], strides = [1, 1]} : vector<8x128xf32> to vector<8x4xf32>
    %77 = vector.extract_strided_slice %0 {offsets = [0, 17], sizes = [8, 4], strides = [1, 1]} : vector<8x128xf32> to vector<8x4xf32>
    %cst_23 = arith.constant dense<0xFF800000> : vector<8xf32>
    %78 = vector.multi_reduction <maximumf>, %76, %cst_23 [1] : vector<8x4xf32> to vector<8xf32>
    %79 = vector.shape_cast %78 : vector<8xf32> to vector<8x1xf32>
    %80 = vector.broadcast %79 : vector<8x1xf32> to vector<8x4xf32>
    %81 = arith.subf %76, %80 : vector<8x4xf32>
    %82 = math.exp %81 : vector<8x4xf32>
    %cst_24 = arith.constant dense<0.000000e+00> : vector<8xf32>
    %83 = vector.multi_reduction <add>, %82, %cst_24 [1] : vector<8x4xf32> to vector<8xf32>
    %84 = vector.shape_cast %83 : vector<8xf32> to vector<8x1xf32>
    %85 = math.log %84 : vector<8x1xf32>
    %86 = arith.addf %79, %85 : vector<8x1xf32>
    %87 = vector.broadcast %86 : vector<8x1xf32> to vector<8x4xf32>
    %88 = arith.subf %76, %87 : vector<8x4xf32>
    %89 = arith.mulf %88, %77 : vector<8x4xf32>
    %cst_25 = arith.constant dense<0.000000e+00> : vector<8xf32>
    %90 = vector.multi_reduction <add>, %89, %cst_25 [1] : vector<8x4xf32> to vector<8xf32>
    %91 = vector.shape_cast %90 : vector<8xf32> to vector<8x1xf32>
    %92 = vector.shape_cast %91 : vector<8x1xf32> to vector<1x8x1xf32>
    %cst_26 = arith.constant dense<0.000000e+00> : vector<1xf32>
    %93 = vector.multi_reduction <add>, %92, %cst_26 [1, 2] : vector<1x8x1xf32> to vector<1xf32>
    %94 = vector.shape_cast %93 : vector<1xf32> to vector<1x1x1xf32>
    %95 = vector.extract %94[0, 0, 0] : f32 from vector<1x1x1xf32>
    %96 = vector.broadcast %95 : f32 to vector<1x1xf32>
    %cst_27 = arith.constant 8.000000e+00 : f32
    %97 = vector.broadcast %cst_27 : f32 to vector<1x1xf32>
    %98 = arith.divf %96, %97 : vector<1x1xf32>
    %cst_28 = arith.constant 0.000000e+00 : f32
    %99 = vector.broadcast %cst_28 : f32 to vector<1x1xf32>
    %100 = arith.subf %99, %98 : vector<1x1xf32>
    %101 = vector.extract_strided_slice %0 {offsets = [0, 21], sizes = [8, 1], strides = [1, 1]} : vector<8x128xf32> to vector<8x1xf32>
    %102 = vector.extract_strided_slice %0 {offsets = [0, 13], sizes = [8, 4], strides = [1, 1]} : vector<8x128xf32> to vector<8x4xf32>
    %cst_29 = arith.constant 0.785398185 : f32
    %103 = vector.broadcast %cst_29 : f32 to vector<8x1xf32>
    %104 = arith.divf %101, %103 : vector<8x1xf32>
    %105 = arith.mulf %102, %77 : vector<8x4xf32>
    %cst_30 = arith.constant dense<0.000000e+00> : vector<8xf32>
    %106 = vector.multi_reduction <add>, %105, %cst_30 [1] : vector<8x4xf32> to vector<8xf32>
    %107 = vector.shape_cast %106 : vector<8xf32> to vector<8x1xf32>
    %108 = arith.subf %107, %104 : vector<8x1xf32>
    %109 = math.absf %108 : vector<8x1xf32>
    %cst_31 = arith.constant 1.000000e+00 : f32
    %110 = vector.broadcast %cst_31 : f32 to vector<8x1xf32>
    %111 = arith.minimumf %109, %110 : vector<8x1xf32>
    %112 = arith.subf %109, %111 : vector<8x1xf32>
    %cst_32 = arith.constant 5.000000e-01 : f32
    %113 = vector.broadcast %cst_32 : f32 to vector<8x1xf32>
    %114 = arith.mulf %113, %111 : vector<8x1xf32>
    %115 = arith.mulf %114, %111 : vector<8x1xf32>
    %cst_33 = arith.constant 1.000000e+00 : f32
    %116 = vector.broadcast %cst_33 : f32 to vector<8x1xf32>
    %117 = arith.mulf %116, %112 : vector<8x1xf32>
    %118 = arith.addf %115, %117 : vector<8x1xf32>
    %119 = vector.shape_cast %118 : vector<8x1xf32> to vector<1x8x1xf32>
    %cst_34 = arith.constant dense<0.000000e+00> : vector<1xf32>
    %120 = vector.multi_reduction <add>, %119, %cst_34 [1, 2] : vector<1x8x1xf32> to vector<1xf32>
    %121 = vector.shape_cast %120 : vector<1xf32> to vector<1x1x1xf32>
    %122 = vector.extract %121[0, 0, 0] : f32 from vector<1x1x1xf32>
    %123 = vector.broadcast %122 : f32 to vector<1x1xf32>
    %cst_35 = arith.constant 8.000000e+00 : f32
    %124 = vector.broadcast %cst_35 : f32 to vector<1x1xf32>
    %125 = arith.divf %123, %124 : vector<1x1xf32>
    %126 = vector.extract_strided_slice %0 {offsets = [0, 22], sizes = [8, 1], strides = [1, 1]} : vector<8x128xf32> to vector<8x1xf32>
    %127 = vector.extract_strided_slice %0 {offsets = [0, 23], sizes = [8, 1], strides = [1, 1]} : vector<8x128xf32> to vector<8x1xf32>
    %cst_36 = arith.constant dense<0xFF800000> : vector<8xf32>
    %128 = vector.multi_reduction <maximumf>, %126, %cst_36 [1] : vector<8x1xf32> to vector<8xf32>
    %129 = vector.shape_cast %128 : vector<8xf32> to vector<8x1xf32>
    %130 = arith.subf %126, %129 : vector<8x1xf32>
    %131 = math.exp %130 : vector<8x1xf32>
    %cst_37 = arith.constant dense<0.000000e+00> : vector<8xf32>
    %132 = vector.multi_reduction <add>, %131, %cst_37 [1] : vector<8x1xf32> to vector<8xf32>
    %133 = vector.shape_cast %132 : vector<8xf32> to vector<8x1xf32>
    %134 = math.log %133 : vector<8x1xf32>
    %135 = arith.addf %129, %134 : vector<8x1xf32>
    %136 = arith.subf %126, %135 : vector<8x1xf32>
    %137 = arith.mulf %136, %127 : vector<8x1xf32>
    %cst_38 = arith.constant dense<0.000000e+00> : vector<8xf32>
    %138 = vector.multi_reduction <add>, %137, %cst_38 [1] : vector<8x1xf32> to vector<8xf32>
    %139 = vector.shape_cast %138 : vector<8xf32> to vector<8x1xf32>
    %140 = vector.shape_cast %139 : vector<8x1xf32> to vector<1x8x1xf32>
    %cst_39 = arith.constant dense<0.000000e+00> : vector<1xf32>
    %141 = vector.multi_reduction <add>, %140, %cst_39 [1, 2] : vector<1x8x1xf32> to vector<1xf32>
    %142 = vector.shape_cast %141 : vector<1xf32> to vector<1x1x1xf32>
    %143 = vector.extract %142[0, 0, 0] : f32 from vector<1x1x1xf32>
    %144 = vector.broadcast %143 : f32 to vector<1x1xf32>
    %cst_40 = arith.constant 8.000000e+00 : f32
    %145 = vector.broadcast %cst_40 : f32 to vector<1x1xf32>
    %146 = arith.divf %144, %145 : vector<1x1xf32>
    %cst_41 = arith.constant 0.000000e+00 : f32
    %147 = vector.broadcast %cst_41 : f32 to vector<1x1xf32>
    %148 = arith.subf %147, %146 : vector<1x1xf32>
    %149 = vector.extract_strided_slice %0 {offsets = [0, 24], sizes = [8, 3], strides = [1, 1]} : vector<8x128xf32> to vector<8x3xf32>
    %150 = vector.extract_strided_slice %0 {offsets = [0, 30], sizes = [8, 3], strides = [1, 1]} : vector<8x128xf32> to vector<8x3xf32>
    %151 = vector.broadcast %127 : vector<8x1xf32> to vector<8x3xf32>
    %152 = arith.mulf %151, %149 : vector<8x3xf32>
    %cst_42 = arith.constant 0.000000e+00 : f32
    %153 = vector.broadcast %cst_42 : f32 to vector<8x1xf32>
    %154 = arith.cmpf ogt, %127, %153 : vector<8x1xf32>
    %cst_43 = arith.constant 1.000000e+00 : f32
    %155 = vector.broadcast %cst_43 : f32 to vector<8x1xf32>
    %156 = arith.select %154, %127, %155 : vector<8x1xi1>, vector<8x1xf32>
    %157 = vector.extract_strided_slice %150 {offsets = [0, 0], sizes = [8, 1], strides = [1, 1]} : vector<8x3xf32> to vector<8x1xf32>
    %cst_44 = arith.constant 3.900000e+00 : f32
    %158 = vector.broadcast %cst_44 : f32 to vector<8x1xf32>
    %159 = arith.mulf %156, %158 : vector<8x1xf32>
    %160 = arith.divf %157, %159 : vector<8x1xf32>
    %161 = vector.extract_strided_slice %152 {offsets = [0, 0], sizes = [8, 1], strides = [1, 1]} : vector<8x3xf32> to vector<8x1xf32>
    %162 = arith.subf %160, %161 : vector<8x1xf32>
    %163 = vector.extract_strided_slice %150 {offsets = [0, 1], sizes = [8, 1], strides = [1, 1]} : vector<8x3xf32> to vector<8x1xf32>
    %cst_45 = arith.constant 1.600000e+00 : f32
    %164 = vector.broadcast %cst_45 : f32 to vector<8x1xf32>
    %165 = arith.mulf %156, %164 : vector<8x1xf32>
    %166 = arith.divf %163, %165 : vector<8x1xf32>
    %167 = vector.extract_strided_slice %152 {offsets = [0, 1], sizes = [8, 1], strides = [1, 1]} : vector<8x3xf32> to vector<8x1xf32>
    %168 = arith.subf %166, %167 : vector<8x1xf32>
    %169 = vector.extract_strided_slice %150 {offsets = [0, 2], sizes = [8, 1], strides = [1, 1]} : vector<8x3xf32> to vector<8x1xf32>
    %cst_46 = arith.constant 1.560000e+00 : f32
    %170 = vector.broadcast %cst_46 : f32 to vector<8x1xf32>
    %171 = arith.mulf %156, %170 : vector<8x1xf32>
    %172 = arith.divf %169, %171 : vector<8x1xf32>
    %173 = vector.extract_strided_slice %152 {offsets = [0, 2], sizes = [8, 1], strides = [1, 1]} : vector<8x3xf32> to vector<8x1xf32>
    %174 = arith.subf %172, %173 : vector<8x1xf32>
    %175 = arith.mulf %162, %162 : vector<8x1xf32>
    %176 = arith.mulf %168, %168 : vector<8x1xf32>
    %177 = arith.addf %175, %176 : vector<8x1xf32>
    %178 = arith.mulf %174, %174 : vector<8x1xf32>
    %179 = arith.addf %177, %178 : vector<8x1xf32>
    %180 = math.sqrt %179 : vector<8x1xf32>
    %181 = math.absf %180 : vector<8x1xf32>
    %cst_47 = arith.constant 1.000000e+00 : f32
    %182 = vector.broadcast %cst_47 : f32 to vector<8x1xf32>
    %183 = arith.minimumf %181, %182 : vector<8x1xf32>
    %184 = arith.subf %181, %183 : vector<8x1xf32>
    %cst_48 = arith.constant 5.000000e-01 : f32
    %185 = vector.broadcast %cst_48 : f32 to vector<8x1xf32>
    %186 = arith.mulf %185, %183 : vector<8x1xf32>
    %187 = arith.mulf %186, %183 : vector<8x1xf32>
    %cst_49 = arith.constant 1.000000e+00 : f32
    %188 = vector.broadcast %cst_49 : f32 to vector<8x1xf32>
    %189 = arith.mulf %188, %184 : vector<8x1xf32>
    %190 = arith.addf %187, %189 : vector<8x1xf32>
    %191 = vector.shape_cast %190 : vector<8x1xf32> to vector<1x8x1xf32>
    %cst_50 = arith.constant dense<0.000000e+00> : vector<1xf32>
    %192 = vector.multi_reduction <add>, %191, %cst_50 [1, 2] : vector<1x8x1xf32> to vector<1xf32>
    %193 = vector.shape_cast %192 : vector<1xf32> to vector<1x1x1xf32>
    %194 = vector.extract %193[0, 0, 0] : f32 from vector<1x1x1xf32>
    %195 = vector.broadcast %194 : f32 to vector<1x1xf32>
    %cst_51 = arith.constant 8.000000e+00 : f32
    %196 = vector.broadcast %cst_51 : f32 to vector<1x1xf32>
    %197 = arith.divf %195, %196 : vector<1x1xf32>
    %198 = tpu.iota {dimensions = array<i32: 1>} : vector<1x8xi32>
    %c4_i32 = arith.constant 4 : i32
    %c0_i32 = arith.constant 0 : i32
    %199 = arith.cmpi eq, %c4_i32, %c0_i32 : i32
    %c1_i32 = arith.constant 1 : i32
    %200 = arith.select %199, %c1_i32, %c4_i32 : i32
    %201 = vector.broadcast %200 : i32 to vector<1x8xi32>
    %202 = arith.remsi %198, %201 : vector<1x8xi32>
    %c0_i32_52 = arith.constant 0 : i32
    %203 = vector.broadcast %c0_i32_52 : i32 to vector<1x8xi32>
    %204 = arith.cmpi ne, %202, %203 : vector<1x8xi32>
    %c0_i32_53 = arith.constant 0 : i32
    %205 = vector.broadcast %c0_i32_53 : i32 to vector<1x8xi32>
    %206 = arith.cmpi slt, %202, %205 : vector<1x8xi32>
    %c0_i32_54 = arith.constant 0 : i32
    %207 = arith.cmpi slt, %200, %c0_i32_54 : i32
    %208 = vector.broadcast %207 : i1 to vector<1x8xi1>
    %209 = vector.broadcast %208 : vector<1x8xi1> to vector<1x8xi1>
    %210 = arith.xori %206, %209 : vector<1x8xi1>
    %211 = arith.andi %210, %204 : vector<1x8xi1>
    %212 = vector.broadcast %200 : i32 to vector<1x8xi32>
    %213 = arith.addi %202, %212 : vector<1x8xi32>
    %214 = arith.select %211, %213, %202 : vector<1x8xi1>, vector<1x8xi32>
    %c2_i32 = arith.constant 2 : i32
    %215 = vector.broadcast %c2_i32 : i32 to vector<1x8xi32>
    %216 = arith.cmpi slt, %214, %215 : vector<1x8xi32>
    %cst_55 = arith.constant 5.000000e-01 : f32
    %cst_56 = arith.constant -5.000000e-01 : f32
    %217 = vector.broadcast %cst_55 : f32 to vector<1x8xf32>
    %218 = vector.broadcast %cst_56 : f32 to vector<1x8xf32>
    %219 = arith.select %216, %217, %218 : vector<1x8xi1>, vector<1x8xf32>
    %c4_i32_57 = arith.constant 4 : i32
    %220 = vector.broadcast %c4_i32_57 : i32 to vector<1x8xi32>
    %221 = arith.cmpi slt, %198, %220 : vector<1x8xi32>
    %cst_58 = arith.constant 5.000000e-01 : f32
    %cst_59 = arith.constant -5.000000e-01 : f32
    %222 = vector.broadcast %cst_58 : f32 to vector<1x8xf32>
    %223 = vector.broadcast %cst_59 : f32 to vector<1x8xf32>
    %224 = arith.select %221, %222, %223 : vector<1x8xi1>, vector<1x8xf32>
    %c0_i32_60 = arith.constant 0 : i32
    %225 = vector.broadcast %c0_i32_60 : i32 to vector<1x8xi32>
    %226 = arith.cmpi eq, %214, %225 : vector<1x8xi32>
    %c3_i32 = arith.constant 3 : i32
    %227 = vector.broadcast %c3_i32 : i32 to vector<1x8xi32>
    %228 = arith.cmpi eq, %214, %227 : vector<1x8xi32>
    %229 = arith.ori %226, %228 : vector<1x8xi1>
    %cst_61 = arith.constant 5.000000e-01 : f32
    %cst_62 = arith.constant -5.000000e-01 : f32
    %230 = vector.broadcast %cst_61 : f32 to vector<1x8xf32>
    %231 = vector.broadcast %cst_62 : f32 to vector<1x8xf32>
    %232 = arith.select %229, %230, %231 : vector<1x8xi1>, vector<1x8xf32>
    %233 = vector.extract_strided_slice %0 {offsets = [0, 27], sizes = [8, 3], strides = [1, 1]} : vector<8x128xf32> to vector<8x3xf32>
    %234 = vector.extract_strided_slice %233 {offsets = [0, 0], sizes = [8, 1], strides = [1, 1]} : vector<8x3xf32> to vector<8x1xf32>
    %cst_63 = arith.constant 2.000000e+00 : f32
    %235 = vector.broadcast %cst_63 : f32 to vector<8x1xf32>
    %236 = arith.mulf %235, %234 : vector<8x1xf32>
    %cst_64 = arith.constant 3.900000e+00 : f32
    %237 = vector.broadcast %cst_64 : f32 to vector<8x1xf32>
    %238 = arith.addf %237, %236 : vector<8x1xf32>
    %239 = vector.extract_strided_slice %233 {offsets = [0, 1], sizes = [8, 1], strides = [1, 1]} : vector<8x3xf32> to vector<8x1xf32>
    %cst_65 = arith.constant 2.000000e+00 : f32
    %240 = vector.broadcast %cst_65 : f32 to vector<8x1xf32>
    %241 = arith.mulf %240, %239 : vector<8x1xf32>
    %cst_66 = arith.constant 1.600000e+00 : f32
    %242 = vector.broadcast %cst_66 : f32 to vector<8x1xf32>
    %243 = arith.addf %242, %241 : vector<8x1xf32>
    %244 = vector.extract_strided_slice %233 {offsets = [0, 2], sizes = [8, 1], strides = [1, 1]} : vector<8x3xf32> to vector<8x1xf32>
    %cst_67 = arith.constant 2.000000e+00 : f32
    %245 = vector.broadcast %cst_67 : f32 to vector<8x1xf32>
    %246 = arith.mulf %245, %244 : vector<8x1xf32>
    %cst_68 = arith.constant 1.560000e+00 : f32
    %247 = vector.broadcast %cst_68 : f32 to vector<8x1xf32>
    %248 = arith.addf %247, %246 : vector<8x1xf32>
    %249 = vector.broadcast %238 : vector<8x1xf32> to vector<8x8xf32>
    %250 = vector.broadcast %219 : vector<1x8xf32> to vector<8x8xf32>
    %251 = arith.mulf %249, %250 : vector<8x8xf32>
    %252 = vector.broadcast %248 : vector<8x1xf32> to vector<8x8xf32>
    %253 = vector.broadcast %224 : vector<1x8xf32> to vector<8x8xf32>
    %254 = arith.mulf %252, %253 : vector<8x8xf32>
    %255 = vector.broadcast %243 : vector<8x1xf32> to vector<8x8xf32>
    %256 = vector.broadcast %232 : vector<1x8xf32> to vector<8x8xf32>
    %257 = arith.mulf %255, %256 : vector<8x8xf32>
    %258 = vector.extract_strided_slice %29 {offsets = [0, 0], sizes = [8, 1], strides = [1, 1]} : vector<8x3xf32> to vector<8x1xf32>
    %259 = vector.extract_strided_slice %29 {offsets = [0, 1], sizes = [8, 1], strides = [1, 1]} : vector<8x3xf32> to vector<8x1xf32>
    %260 = vector.extract_strided_slice %29 {offsets = [0, 2], sizes = [8, 1], strides = [1, 1]} : vector<8x3xf32> to vector<8x1xf32>
    %261 = vector.extract_strided_slice %0 {offsets = [0, 33], sizes = [8, 1], strides = [1, 1]} : vector<8x128xf32> to vector<8x1xf32>
    %262 = vector.extract_strided_slice %0 {offsets = [0, 34], sizes = [8, 1], strides = [1, 1]} : vector<8x128xf32> to vector<8x1xf32>
    %cst_69 = arith.constant dense<0.000000e+00> : vector<8xf32>
    %263 = vector.multi_reduction <add>, %77, %cst_69 [1] : vector<8x4xf32> to vector<8xf32>
    %264 = vector.shape_cast %263 : vector<8xf32> to vector<8x1xf32>
    %265 = vector.broadcast %261 : vector<8x1xf32> to vector<8x8xf32>
    %266 = arith.mulf %265, %251 : vector<8x8xf32>
    %267 = vector.broadcast %262 : vector<8x1xf32> to vector<8x8xf32>
    %268 = arith.mulf %267, %257 : vector<8x8xf32>
    %269 = arith.addf %266, %268 : vector<8x8xf32>
    %270 = arith.mulf %264, %258 : vector<8x1xf32>
    %271 = vector.broadcast %270 : vector<8x1xf32> to vector<8x8xf32>
    %272 = arith.addf %269, %271 : vector<8x8xf32>
    %273 = vector.broadcast %127 : vector<8x1xf32> to vector<8x8xf32>
    %274 = arith.mulf %273, %272 : vector<8x8xf32>
    %275 = vector.broadcast %259 : vector<8x1xf32> to vector<8x8xf32>
    %276 = arith.addf %254, %275 : vector<8x8xf32>
    %277 = vector.broadcast %264 : vector<8x1xf32> to vector<8x8xf32>
    %278 = arith.mulf %277, %276 : vector<8x8xf32>
    %279 = vector.broadcast %127 : vector<8x1xf32> to vector<8x8xf32>
    %280 = arith.mulf %279, %278 : vector<8x8xf32>
    %cst_70 = arith.constant 0.000000e+00 : f32
    %281 = vector.broadcast %cst_70 : f32 to vector<8x1xf32>
    %282 = arith.subf %281, %262 : vector<8x1xf32>
    %283 = vector.broadcast %282 : vector<8x1xf32> to vector<8x8xf32>
    %284 = arith.mulf %283, %251 : vector<8x8xf32>
    %285 = vector.broadcast %261 : vector<8x1xf32> to vector<8x8xf32>
    %286 = arith.mulf %285, %257 : vector<8x8xf32>
    %287 = arith.addf %284, %286 : vector<8x8xf32>
    %288 = arith.mulf %264, %260 : vector<8x1xf32>
    %289 = vector.broadcast %288 : vector<8x1xf32> to vector<8x8xf32>
    %290 = arith.addf %287, %289 : vector<8x8xf32>
    %291 = vector.broadcast %127 : vector<8x1xf32> to vector<8x8xf32>
    %292 = arith.mulf %291, %290 : vector<8x8xf32>
    %293 = vector.extract_strided_slice %150 {offsets = [0, 0], sizes = [8, 1], strides = [1, 1]} : vector<8x3xf32> to vector<8x1xf32>
    %cst_71 = arith.constant 3.900000e+00 : f32
    %294 = vector.broadcast %cst_71 : f32 to vector<8x1xf32>
    %295 = arith.addf %294, %293 : vector<8x1xf32>
    %296 = arith.mulf %127, %295 : vector<8x1xf32>
    %297 = vector.extract_strided_slice %150 {offsets = [0, 1], sizes = [8, 1], strides = [1, 1]} : vector<8x3xf32> to vector<8x1xf32>
    %cst_72 = arith.constant 1.600000e+00 : f32
    %298 = vector.broadcast %cst_72 : f32 to vector<8x1xf32>
    %299 = arith.addf %298, %297 : vector<8x1xf32>
    %300 = arith.mulf %127, %299 : vector<8x1xf32>
    %301 = vector.extract_strided_slice %150 {offsets = [0, 2], sizes = [8, 1], strides = [1, 1]} : vector<8x3xf32> to vector<8x1xf32>
    %cst_73 = arith.constant 1.560000e+00 : f32
    %302 = vector.broadcast %cst_73 : f32 to vector<8x1xf32>
    %303 = arith.addf %302, %301 : vector<8x1xf32>
    %304 = arith.mulf %127, %303 : vector<8x1xf32>
    %305 = vector.broadcast %296 : vector<8x1xf32> to vector<8x8xf32>
    %306 = vector.broadcast %219 : vector<1x8xf32> to vector<8x8xf32>
    %307 = arith.mulf %305, %306 : vector<8x8xf32>
    %308 = vector.broadcast %304 : vector<8x1xf32> to vector<8x8xf32>
    %309 = vector.broadcast %224 : vector<1x8xf32> to vector<8x8xf32>
    %310 = arith.mulf %308, %309 : vector<8x8xf32>
    %311 = vector.broadcast %300 : vector<8x1xf32> to vector<8x8xf32>
    %312 = vector.broadcast %232 : vector<1x8xf32> to vector<8x8xf32>
    %313 = arith.mulf %311, %312 : vector<8x8xf32>
    %314 = vector.extract_strided_slice %30 {offsets = [0, 0], sizes = [8, 1], strides = [1, 1]} : vector<8x3xf32> to vector<8x1xf32>
    %315 = vector.extract_strided_slice %30 {offsets = [0, 1], sizes = [8, 1], strides = [1, 1]} : vector<8x3xf32> to vector<8x1xf32>
    %316 = vector.extract_strided_slice %30 {offsets = [0, 2], sizes = [8, 1], strides = [1, 1]} : vector<8x3xf32> to vector<8x1xf32>
    %317 = vector.extract_strided_slice %0 {offsets = [0, 35], sizes = [8, 1], strides = [1, 1]} : vector<8x128xf32> to vector<8x1xf32>
    %318 = vector.extract_strided_slice %0 {offsets = [0, 36], sizes = [8, 1], strides = [1, 1]} : vector<8x128xf32> to vector<8x1xf32>
    %319 = vector.broadcast %317 : vector<8x1xf32> to vector<8x8xf32>
    %320 = arith.mulf %319, %307 : vector<8x8xf32>
    %321 = vector.broadcast %318 : vector<8x1xf32> to vector<8x8xf32>
    %322 = arith.mulf %321, %313 : vector<8x8xf32>
    %323 = arith.addf %320, %322 : vector<8x8xf32>
    %324 = vector.broadcast %314 : vector<8x1xf32> to vector<8x8xf32>
    %325 = arith.addf %323, %324 : vector<8x8xf32>
    %326 = vector.broadcast %315 : vector<8x1xf32> to vector<8x8xf32>
    %327 = arith.addf %310, %326 : vector<8x8xf32>
    %cst_74 = arith.constant 0.000000e+00 : f32
    %328 = vector.broadcast %cst_74 : f32 to vector<8x1xf32>
    %329 = arith.subf %328, %318 : vector<8x1xf32>
    %330 = vector.broadcast %329 : vector<8x1xf32> to vector<8x8xf32>
    %331 = arith.mulf %330, %307 : vector<8x8xf32>
    %332 = vector.broadcast %317 : vector<8x1xf32> to vector<8x8xf32>
    %333 = arith.mulf %332, %313 : vector<8x8xf32>
    %334 = arith.addf %331, %333 : vector<8x8xf32>
    %335 = vector.broadcast %316 : vector<8x1xf32> to vector<8x8xf32>
    %336 = arith.addf %334, %335 : vector<8x8xf32>
    %cst_75 = arith.constant 0.000000e+00 : f32
    %337 = vector.broadcast %cst_75 : f32 to vector<8x1xf32>
    %338 = arith.subf %337, %317 : vector<8x1xf32>
    %339 = vector.broadcast %338 : vector<8x1xf32> to vector<8x8xf32>
    %340 = arith.mulf %339, %307 : vector<8x8xf32>
    %341 = vector.broadcast %318 : vector<8x1xf32> to vector<8x8xf32>
    %342 = arith.mulf %341, %313 : vector<8x8xf32>
    %343 = arith.subf %340, %342 : vector<8x8xf32>
    %344 = vector.broadcast %314 : vector<8x1xf32> to vector<8x8xf32>
    %345 = arith.addf %343, %344 : vector<8x8xf32>
    %346 = vector.broadcast %318 : vector<8x1xf32> to vector<8x8xf32>
    %347 = arith.mulf %346, %307 : vector<8x8xf32>
    %348 = vector.broadcast %317 : vector<8x1xf32> to vector<8x8xf32>
    %349 = arith.mulf %348, %313 : vector<8x8xf32>
    %350 = arith.subf %347, %349 : vector<8x8xf32>
    %351 = vector.broadcast %316 : vector<8x1xf32> to vector<8x8xf32>
    %352 = arith.addf %350, %351 : vector<8x8xf32>
    %353 = arith.subf %274, %325 : vector<8x8xf32>
    %354 = arith.subf %280, %327 : vector<8x8xf32>
    %355 = arith.subf %292, %336 : vector<8x8xf32>
    %356 = arith.subf %274, %345 : vector<8x8xf32>
    %357 = arith.subf %292, %352 : vector<8x8xf32>
    %358 = arith.mulf %353, %353 : vector<8x8xf32>
    %359 = arith.mulf %354, %354 : vector<8x8xf32>
    %360 = arith.addf %358, %359 : vector<8x8xf32>
    %361 = arith.mulf %355, %355 : vector<8x8xf32>
    %362 = arith.addf %360, %361 : vector<8x8xf32>
    %363 = math.sqrt %362 : vector<8x8xf32>
    %364 = arith.mulf %356, %356 : vector<8x8xf32>
    %365 = arith.mulf %354, %354 : vector<8x8xf32>
    %366 = arith.addf %364, %365 : vector<8x8xf32>
    %367 = arith.mulf %357, %357 : vector<8x8xf32>
    %368 = arith.addf %366, %367 : vector<8x8xf32>
    %369 = math.sqrt %368 : vector<8x8xf32>
    %370 = arith.minimumf %363, %369 : vector<8x8xf32>
    %371 = math.absf %370 : vector<8x8xf32>
    %cst_76 = arith.constant 1.000000e+00 : f32
    %372 = vector.broadcast %cst_76 : f32 to vector<8x8xf32>
    %373 = arith.minimumf %371, %372 : vector<8x8xf32>
    %374 = arith.subf %371, %373 : vector<8x8xf32>
    %cst_77 = arith.constant 5.000000e-01 : f32
    %375 = vector.broadcast %cst_77 : f32 to vector<8x8xf32>
    %376 = arith.mulf %375, %373 : vector<8x8xf32>
    %377 = arith.mulf %376, %373 : vector<8x8xf32>
    %cst_78 = arith.constant 1.000000e+00 : f32
    %378 = vector.broadcast %cst_78 : f32 to vector<8x8xf32>
    %379 = arith.mulf %378, %374 : vector<8x8xf32>
    %380 = arith.addf %377, %379 : vector<8x8xf32>
    %381 = vector.shape_cast %380 : vector<8x8xf32> to vector<1x8x8xf32>
    %cst_79 = arith.constant dense<0.000000e+00> : vector<1xf32>
    %382 = vector.multi_reduction <add>, %381, %cst_79 [1, 2] : vector<1x8x8xf32> to vector<1xf32>
    %383 = vector.shape_cast %382 : vector<1xf32> to vector<1x1x1xf32>
    %384 = vector.extract %383[0, 0, 0] : f32 from vector<1x1x1xf32>
    %385 = vector.broadcast %384 : f32 to vector<1x1xf32>
    %cst_80 = arith.constant 6.400000e+01 : f32
    %386 = vector.broadcast %cst_80 : f32 to vector<1x1xf32>
    %387 = arith.divf %385, %386 : vector<1x1xf32>
    %388 = arith.addf %53, %100 : vector<1x1xf32>
    %389 = arith.addf %388, %148 : vector<1x1xf32>
    %cst_81 = arith.constant 2.000000e+01 : f32
    %390 = vector.broadcast %cst_81 : f32 to vector<1x1xf32>
    %391 = arith.mulf %125, %390 : vector<1x1xf32>
    %392 = arith.addf %389, %391 : vector<1x1xf32>
    %cst_82 = arith.constant 2.000000e+01 : f32
    %393 = vector.broadcast %cst_82 : f32 to vector<1x1xf32>
    %394 = arith.mulf %197, %393 : vector<1x1xf32>
    %395 = arith.addf %392, %394 : vector<1x1xf32>
    %396 = arith.addf %395, %75 : vector<1x1xf32>
    %cst_83 = arith.constant 1.000000e+01 : f32
    %397 = vector.broadcast %cst_83 : f32 to vector<1x1xf32>
    %398 = arith.mulf %397, %387 : vector<1x1xf32>
    %399 = arith.addf %396, %398 : vector<1x1xf32>
    %cst_84 = arith.constant 1.000000e+00 : f32
    %400 = vector.broadcast %cst_84 : f32 to vector<1x1xf32>
    %401 = arith.mulf %400, %399 : vector<1x1xf32>
    %402 = arith.addf %28, %401 : vector<1x1xf32>
    %cst_85 = arith.constant 1.000000e+00 : f32
    %403 = vector.broadcast %cst_85 : f32 to vector<1x1xf32>
    %404 = arith.mulf %403, %53 : vector<1x1xf32>
    %cst_86 = arith.constant 1.000000e+00 : f32
    %405 = vector.broadcast %cst_86 : f32 to vector<1x1xf32>
    %406 = arith.mulf %405, %100 : vector<1x1xf32>
    %cst_87 = arith.constant 1.000000e+00 : f32
    %407 = vector.broadcast %cst_87 : f32 to vector<1x1xf32>
    %408 = arith.mulf %407, %148 : vector<1x1xf32>
    %cst_88 = arith.constant 1.000000e+00 : f32
    %409 = vector.broadcast %cst_88 : f32 to vector<1x1xf32>
    %410 = arith.mulf %409, %125 : vector<1x1xf32>
    %cst_89 = arith.constant 2.000000e+01 : f32
    %411 = vector.broadcast %cst_89 : f32 to vector<1x1xf32>
    %412 = arith.mulf %410, %411 : vector<1x1xf32>
    %cst_90 = arith.constant 1.000000e+00 : f32
    %413 = vector.broadcast %cst_90 : f32 to vector<1x1xf32>
    %414 = arith.mulf %413, %197 : vector<1x1xf32>
    %cst_91 = arith.constant 2.000000e+01 : f32
    %415 = vector.broadcast %cst_91 : f32 to vector<1x1xf32>
    %416 = arith.mulf %414, %415 : vector<1x1xf32>
    %cst_92 = arith.constant 1.000000e+00 : f32
    %417 = vector.broadcast %cst_92 : f32 to vector<1x1xf32>
    %418 = arith.mulf %417, %197 : vector<1x1xf32>
    %cst_93 = arith.constant 2.000000e+01 : f32
    %419 = vector.broadcast %cst_93 : f32 to vector<1x1xf32>
    %420 = arith.mulf %418, %419 : vector<1x1xf32>
    %cst_94 = arith.constant 1.000000e+00 : f32
    %421 = vector.broadcast %cst_94 : f32 to vector<1x1xf32>
    %422 = arith.mulf %421, %387 : vector<1x1xf32>
    %cst_95 = arith.constant 1.000000e+01 : f32
    %423 = vector.broadcast %cst_95 : f32 to vector<1x1xf32>
    %424 = arith.mulf %422, %423 : vector<1x1xf32>
    %425 = tpu.iota {dimensions = array<i32: 1>} : vector<1x128xi32>
    %cst_96 = arith.constant 0.000000e+00 : f32
    %426 = vector.broadcast %cst_96 : f32 to vector<1x128xf32>
    %c0_i32_97 = arith.constant 0 : i32
    %427 = vector.broadcast %c0_i32_97 : i32 to vector<1x128xi32>
    %428 = arith.cmpi eq, %425, %427 : vector<1x128xi32>
    %cst_98 = arith.constant 0.000000e+00 : f32
    %429 = vector.shape_cast %402 : vector<1x1xf32> to vector<1x1xf32>
    %430 = vector.broadcast %429 : vector<1x1xf32> to vector<1x128xf32>
    %431 = vector.broadcast %cst_98 : f32 to vector<1x128xf32>
    %432 = arith.select %428, %430, %431 : vector<1x128xi1>, vector<1x128xf32>
    %433 = arith.addf %426, %432 : vector<1x128xf32>
    %c1_i32_99 = arith.constant 1 : i32
    %434 = vector.broadcast %c1_i32_99 : i32 to vector<1x128xi32>
    %435 = arith.cmpi eq, %425, %434 : vector<1x128xi32>
    %cst_100 = arith.constant 0.000000e+00 : f32
    %436 = vector.shape_cast %404 : vector<1x1xf32> to vector<1x1xf32>
    %437 = vector.broadcast %436 : vector<1x1xf32> to vector<1x128xf32>
    %438 = vector.broadcast %cst_100 : f32 to vector<1x128xf32>
    %439 = arith.select %435, %437, %438 : vector<1x128xi1>, vector<1x128xf32>
    %440 = arith.addf %433, %439 : vector<1x128xf32>
    %c2_i32_101 = arith.constant 2 : i32
    %441 = vector.broadcast %c2_i32_101 : i32 to vector<1x128xi32>
    %442 = arith.cmpi eq, %425, %441 : vector<1x128xi32>
    %cst_102 = arith.constant 0.000000e+00 : f32
    %443 = vector.shape_cast %406 : vector<1x1xf32> to vector<1x1xf32>
    %444 = vector.broadcast %443 : vector<1x1xf32> to vector<1x128xf32>
    %445 = vector.broadcast %cst_102 : f32 to vector<1x128xf32>
    %446 = arith.select %442, %444, %445 : vector<1x128xi1>, vector<1x128xf32>
    %447 = arith.addf %440, %446 : vector<1x128xf32>
    %c3_i32_103 = arith.constant 3 : i32
    %448 = vector.broadcast %c3_i32_103 : i32 to vector<1x128xi32>
    %449 = arith.cmpi eq, %425, %448 : vector<1x128xi32>
    %cst_104 = arith.constant 0.000000e+00 : f32
    %450 = vector.shape_cast %408 : vector<1x1xf32> to vector<1x1xf32>
    %451 = vector.broadcast %450 : vector<1x1xf32> to vector<1x128xf32>
    %452 = vector.broadcast %cst_104 : f32 to vector<1x128xf32>
    %453 = arith.select %449, %451, %452 : vector<1x128xi1>, vector<1x128xf32>
    %454 = arith.addf %447, %453 : vector<1x128xf32>
    %c4_i32_105 = arith.constant 4 : i32
    %455 = vector.broadcast %c4_i32_105 : i32 to vector<1x128xi32>
    %456 = arith.cmpi eq, %425, %455 : vector<1x128xi32>
    %cst_106 = arith.constant 0.000000e+00 : f32
    %457 = vector.shape_cast %412 : vector<1x1xf32> to vector<1x1xf32>
    %458 = vector.broadcast %457 : vector<1x1xf32> to vector<1x128xf32>
    %459 = vector.broadcast %cst_106 : f32 to vector<1x128xf32>
    %460 = arith.select %456, %458, %459 : vector<1x128xi1>, vector<1x128xf32>
    %461 = arith.addf %454, %460 : vector<1x128xf32>
    %c5_i32 = arith.constant 5 : i32
    %462 = vector.broadcast %c5_i32 : i32 to vector<1x128xi32>
    %463 = arith.cmpi eq, %425, %462 : vector<1x128xi32>
    %cst_107 = arith.constant 0.000000e+00 : f32
    %464 = vector.shape_cast %416 : vector<1x1xf32> to vector<1x1xf32>
    %465 = vector.broadcast %464 : vector<1x1xf32> to vector<1x128xf32>
    %466 = vector.broadcast %cst_107 : f32 to vector<1x128xf32>
    %467 = arith.select %463, %465, %466 : vector<1x128xi1>, vector<1x128xf32>
    %468 = arith.addf %461, %467 : vector<1x128xf32>
    %c6_i32 = arith.constant 6 : i32
    %469 = vector.broadcast %c6_i32 : i32 to vector<1x128xi32>
    %470 = arith.cmpi eq, %425, %469 : vector<1x128xi32>
    %cst_108 = arith.constant 0.000000e+00 : f32
    %471 = vector.shape_cast %420 : vector<1x1xf32> to vector<1x1xf32>
    %472 = vector.broadcast %471 : vector<1x1xf32> to vector<1x128xf32>
    %473 = vector.broadcast %cst_108 : f32 to vector<1x128xf32>
    %474 = arith.select %470, %472, %473 : vector<1x128xi1>, vector<1x128xf32>
    %475 = arith.addf %468, %474 : vector<1x128xf32>
    %c7_i32 = arith.constant 7 : i32
    %476 = vector.broadcast %c7_i32 : i32 to vector<1x128xi32>
    %477 = arith.cmpi eq, %425, %476 : vector<1x128xi32>
    %cst_109 = arith.constant 0.000000e+00 : f32
    %478 = vector.shape_cast %424 : vector<1x1xf32> to vector<1x1xf32>
    %479 = vector.broadcast %478 : vector<1x1xf32> to vector<1x128xf32>
    %480 = vector.broadcast %cst_109 : f32 to vector<1x128xf32>
    %481 = arith.select %477, %479, %480 : vector<1x128xi1>, vector<1x128xf32>
    %482 = arith.addf %475, %481 : vector<1x128xf32>
    %c0_110 = arith.constant 0 : index
    %c0_111 = arith.constant 0 : index
    %483 = vector.load %arg2[%c0_110, %c0_111] : memref<1x128xf32, #tpu.memory_space<vmem>>, vector<1x128xf32>
    tpu.vector_store %arg2[%c0_110, %c0_111], %482 {strides = array<i32>} : memref<1x128xf32, #tpu.memory_space<vmem>>, vector<1x128xf32>,
    return
  }
}

</mosaic_0001>

<llo_original>
// kernel: tpu_custom_call.1
$region0: #{tpu_custom_call.1}
  #allocation0 [shape = 'u32[]', space=smem, size = 0x4, offset = 0x4, fixed_abs, tag = 'smem constant byte address 0x4 - core index']
  #allocation1 [shape = 'u32[144,128]{1,0:T(1,128)}', space=vmem, size = 0x12000, scoped, tag = 'internal scratch']
  %s0 = inlined_call_operand.hbm [shape: f32[3,8,128], index: 0, kind: input, shape index: {}]
  %s1 = inlined_call_operand.hbm [shape: f32[8,128], index: 1, kind: input, shape index: {}]
  %s2 = inlined_call_operand.hbm [shape: f32[1,128], index: 2, kind: output, shape index: {}]
  %s3 = sld [smem:[#allocation0]]
  $region26: #{tpu_custom_call.1} parent=0
    _
  %s5 = ssub.s32 1, %s3
  %s6 = scalar_select 0, %s5, %s3
  $region1: #{tpu_custom_call.1} parent=0
    #allocation2 [shape = 'u8[12288]{0}', space=vmem, size = 0x3000, scoped, tag = 'input window, operand 0, single buffered']
    #allocation3 [shape = 's32[1]{0}', space=sflag, size = 0x4, scoped, tag = 'scoped memory for tpu_custom_call.1']
    #allocation4 [shape = 's32[1]{0}', space=sflag, size = 0x4, scoped, tag = 'scoped memory for tpu_custom_call.1']
    #allocation5 [shape = 'u8[4096]{0}', space=vmem, size = 0x1000, scoped, tag = 'input window, operand 1, single buffered']
    #allocation6 [shape = 's32[1]{0}', space=sflag, size = 0x4, scoped, tag = 'scoped memory for tpu_custom_call.1']
    #allocation7 [shape = 'u8[512]{0}', space=vmem, size = 0x400, scoped, tag = 'output window, operand 0, single buffered']
    %7 = vsyncpa [#allocation3], 0
    %8 = vsyncpa [#allocation6], 0
    %9 = vsyncpa [#allocation4], 0
    // Predicated region
    $region2: #{tpu_custom_call.1} parent=1 // pred_check
      _
    $region3: #{tpu_custom_call.1} parent=1 // pred_check_branch
      %11 = sbr.rel (0) target = $region5
    $region4: #{tpu_custom_call.1} parent=1 // pred_region
      %s13 = ssub.s32 384, 384
      %14 = vsyncadd [#allocation3], %s13
      %s15 = sshll.u32 [#allocation2], 4
      %s16 = int_to_ptr.vmem [resolvable:$true] %s15
      %21 = dma.hbm_to_vmem [thread:$0]  %s0, 384, %s16, [#allocation3], 128, 128, 8
    $region5: #{tpu_custom_call.1} parent=1 // pred_fallthru
      _
    // Predicated region
    $region6: #{tpu_custom_call.1} parent=1 // pred_check
      _
    $region7: #{tpu_custom_call.1} parent=1 // pred_check_branch
      %23 = sbr.rel (0) target = $region9
    $region8: #{tpu_custom_call.1} parent=1 // pred_region
      %s25 = ssub.s32 128, 128
      %26 = vsyncadd [#allocation6], %s25
      %s28 = sshll.u32 [#allocation5], 4
      %s29 = int_to_ptr.vmem [resolvable:$true] %s28
      %31 = dma.hbm_to_vmem [thread:$0]  %s1, 128, %s29, [#allocation6]
    $region9: #{tpu_custom_call.1} parent=1 // pred_fallthru
      _
    // Predicated region
    $region10: #{tpu_custom_call.1} parent=1 // pred_check
      _
    $region11: #{tpu_custom_call.1} parent=1 // pred_check_branch
      %33 = sbr.rel (0) target = $region13
    $region12: #{tpu_custom_call.1} parent=1 // pred_region
      %34 = dma.done [#allocation3], 384
    $region13: #{tpu_custom_call.1} parent=1 // pred_fallthru
      _
    // Predicated region
    $region14: #{tpu_custom_call.1} parent=1 // pred_check
      _
    $region15: #{tpu_custom_call.1} parent=1 // pred_check_branch
      %36 = sbr.rel (0) target = $region17
    $region16: #{tpu_custom_call.1} parent=1 // pred_region
      %37 = dma.done [#allocation6], 128
    $region17: #{tpu_custom_call.1} parent=1 // pred_fallthru
      _
    %v38 = vld [vmem:[#allocation5] sm:$0xff]
    %v39 = vld [vmem:[#allocation2] sm:$0xff]
    %s40 = scalar_lea.vmem [#allocation2], 8
    %v41 = vld [vmem:[%s40] sm:$0xff]
    %s42 = scalar_lea.vmem [#allocation2], 16
    %v43 = vld [vmem:[%s42] sm:$0xff]
    %v44 = vmax.f32 %v39, %v41
    %v45 = vsub.f32 %v39, %v44
    %v46 = vmul.f32 %v45, 1.442695
    %v47 = vpow.pop %v46
    %v48 = vsub.f32 %v41, %v44
    %v49 = vmul.f32 %v48, 1.442695
    %v50 = vpow.pop %v49
    %v51 = vadd.f32 %v47, %v50
    %v52 = vlog2.pop %v51
    %v53 = vmul.f32 %v52, 0.6931472
    %v54 = vadd.f32 %v44, %v53
    %vm55 = vcmp.eq.f32.partialorder %v43, 0.0
    %v56 = vsub.f32 %v39, %v54
    %v57 = vsub.f32 %v41, %v54
    %v58 = vsel %vm55, %v56, %v57
    %59 = vadd.xlane.f32.xlu0 %v58
    %v60 = vpop.xlane.xlu0 %59
    %v61 = vrot.slane %v60, 4
    %v62 = vadd.f32 %v60, %v61
    %v63 = vrot.slane %v62, 2
    %v64 = vadd.f32 %v62, %v63
    %v65 = vrot.slane %v64, 1
    %v66 = vadd.f32 %v64, %v65
    %s67 = vtos %v66
    %v68 = vstv %s67
    %v69 = vrcp.pop 1024.0
    %v70 = vmul.f32 %v68, %v69
    %v71 = vsub.f32 0.0, %v70
    %73 = vrot.lane.b32.xlu0 %v38, 125
    %v74 = vpop.permute.xlu0 %73
    %v76 = vsub.f32 %v38, %v74
    %v77 = vmul.f32 %v76, %v76
    %vm78 = vcmask 23552
    %v79 = vsel %vm78, %v77, 0.0
    %80 = vadd.xlane.f32.xlu0 %v79
    %v81 = vpop.xlane.xlu0 %80
    %v82 = vrsqrt.pop %v81
    %v83 = vmul.f32 %v81, %v82
    %vm84 = vcmp.eq.f32.partialorder %v81, inf
    %v85 = vsel %vm84, %v81, %v83
    %vm86 = vcmp.eq.f32.partialorder %v81, 0.0
    %v87 = vand.u32 %v81, 2147483648
    %v88 = vsel %vm86, %v87, %v85
    %v89 = vand.u32 2147483647, %v88
    %v90 = vmin.f32 %v89, 2.0
    %v91 = vsub.f32 %v89, %v90
    %v92 = vmul.f32 %v90, 0.5
    %v93 = vmul.f32 %v92, %v90
    %v94 = vmul.f32 %v91, 2.0
    %v95 = vadd.f32 %v93, %v94
    %vm96 = vcmask 7168
    %v97 = vsel %vm96, %v95, 0.0
    %98 = vadd.xlane.f32.xlu0 %v97
    %v99 = vpop.xlane.xlu0 %98
    %v100 = vrot.slane %v99, 4
    %v101 = vadd.f32 %v99, %v100
    %v102 = vrot.slane %v101, 2
    %v103 = vadd.f32 %v101, %v102
    %v104 = vrot.slane %v103, 1
    %v105 = vadd.f32 %v103, %v104
    %s106 = vtos %v105
    %v107 = vstv %s106
    %v108 = vrcp.pop 8.0
    %v109 = vmul.f32 %v107, %v108
    %110 = vrot.lane.b32.xlu0 %v38, 122
    %v111 = vpop.permute.xlu0 %110
    %v113 = vsub.f32 %v38, %v111
    %v114 = vmul.f32 %v113, %v113
    %v115 = vsel %vm78, %v114, 0.0
    %116 = vadd.xlane.f32.xlu0 %v115
    %v117 = vpop.xlane.xlu0 %116
    %v118 = vrsqrt.pop %v117
    %v119 = vmul.f32 %v117, %v118
    %vm120 = vcmp.eq.f32.partialorder %v117, inf
    %v121 = vsel %vm120, %v117, %v119
    %vm122 = vcmp.eq.f32.partialorder %v117, 0.0
    %v123 = vand.u32 %v117, 2147483648
    %v124 = vsel %vm122, %v123, %v121
    %v125 = vand.u32 2147483647, %v124
    %v126 = vmin.f32 %v125, 1.0
    %v127 = vsub.f32 %v125, %v126
    %v128 = vmul.f32 %v126, 0.5
    %v129 = vmul.f32 %v128, %v126
    %v130 = vadd.f32 %v129, %v127
    %v131 = vsel %vm96, %v130, 0.0
    %132 = vadd.xlane.f32.xlu0 %v131
    %v133 = vpop.xlane.xlu0 %132
    %v134 = vrot.slane %v133, 4
    %v135 = vadd.f32 %v133, %v134
    %v136 = vrot.slane %v135, 2
    %v137 = vadd.f32 %v135, %v136
    %v138 = vrot.slane %v137, 1
    %v139 = vadd.f32 %v137, %v138
    %s140 = vtos %v139
    %v141 = vstv %s140
    %v142 = vmul.f32 %v141, %v108
    %vm143 = vcmask 105544
    %v144 = vsel %vm143, %v38, -inf
    %145 = vmax.xlane.f32.xlu0 %v144
    %v146 = vpop.xlane.xlu0 %145
    %v147 = vsub.f32 %v38, %v146
    %v148 = vmul.f32 %v147, 1.442695
    %v149 = vpow.pop %v148
    %151 = vrot.lane.b32.xlu0 %v149, 119
    %v152 = vpop.permute.xlu0 %151
    %vm154 = vcmask 31744
    %v155 = vsel %vm154, %v152, 0.0
    %156 = vadd.xlane.f32.xlu0 %v155
    %v157 = vpop.xlane.xlu0 %156
    %v158 = vlog2.pop %v157
    %v159 = vmul.f32 %v158, 0.6931472
    %v160 = vadd.f32 %v146, %v159
    %v161 = vsub.f32 %v38, %v160
    %162 = vrot.lane.b32.xlu0 %v38, 120
    %v163 = vpop.permute.xlu0 %162
    %v165 = vmul.f32 %v161, %v163
    %167 = vrot.lane.b32.xlu0 %v165, 119
    %v168 = vpop.permute.xlu0 %167
    %v170 = vsel %vm154, %v168, 0.0
    %171 = vadd.xlane.f32.xlu0 %v170
    %v172 = vpop.xlane.xlu0 %171
    %v173 = vsel %vm96, %v172, 0.0
    %174 = vadd.xlane.f32.xlu0 %v173
    %v175 = vpop.xlane.xlu0 %174
    %v176 = vrot.slane %v175, 4
    %v177 = vadd.f32 %v175, %v176
    %v178 = vrot.slane %v177, 2
    %v179 = vadd.f32 %v177, %v178
    %v180 = vrot.slane %v179, 1
    %v181 = vadd.f32 %v179, %v180
    %s182 = vtos %v181
    %v183 = vstv %s182
    %v184 = vmul.f32 %v183, %v108
    %v185 = vsub.f32 0.0, %v184
    %v186 = vrcp.pop 0.7853982
    %v187 = vmul.f32 %v38, %v186
    %188 = vrot.lane.b32.xlu0 %v38, 124
    %v189 = vpop.permute.xlu0 %188
    %v191 = vmul.f32 %v38, %v189
    %193 = vrot.lane.b32.xlu0 %v191, 115
    %v194 = vpop.permute.xlu0 %193
    %v196 = vsel %vm154, %v194, 0.0
    %197 = vadd.xlane.f32.xlu0 %v196
    %v198 = vpop.xlane.xlu0 %197
    %v199 = vsub.f32 %v198, %v187
    %v200 = vand.u32 2147483647, %v199
    %v201 = vmin.f32 %v200, 1.0
    %v202 = vsub.f32 %v200, %v201
    %v203 = vmul.f32 %v201, 0.5
    %v204 = vmul.f32 %v203, %v201
    %v205 = vadd.f32 %v204, %v202
    %207 = vrot.lane.b32.xlu0 %v205, 107
    %v208 = vpop.permute.xlu0 %207
    %v210 = vsel %vm96, %v208, 0.0
    %211 = vadd.xlane.f32.xlu0 %v210
    %v212 = vpop.xlane.xlu0 %211
    %v213 = vrot.slane %v212, 4
    %v214 = vadd.f32 %v212, %v213
    %v215 = vrot.slane %v214, 2
    %v216 = vadd.f32 %v214, %v215
    %v217 = vrot.slane %v216, 1
    %v218 = vadd.f32 %v216, %v217
    %s219 = vtos %v218
    %v220 = vstv %s219
    %v221 = vmul.f32 %v220, %v108
    %v222 = vsub.f32 %v38, %v38
    %v223 = vmul.f32 %v222, 1.442695
    %v224 = vpow.pop %v223
    %v225 = vadd.f32 %v224, 0.0
    %v226 = vlog2.pop %v225
    %v227 = vmul.f32 %v226, 0.6931472
    %v228 = vadd.f32 %v38, %v227
    %v229 = vsub.f32 %v38, %v228
    %230 = vrot.lane.b32.xlu0 %v38, 127
    %v231 = vpop.permute.xlu0 %230
    %v233 = vmul.f32 %v229, %v231
    %v234 = vadd.f32 %v233, 0.0
    %236 = vrot.lane.b32.xlu0 %v234, 106
    %v237 = vpop.permute.xlu0 %236
    %v239 = vsel %vm96, %v237, 0.0
    %240 = vadd.xlane.f32.xlu0 %v239
    %v241 = vpop.xlane.xlu0 %240
    %v242 = vrot.slane %v241, 4
    %v243 = vadd.f32 %v241, %v242
    %v244 = vrot.slane %v243, 2
    %v245 = vadd.f32 %v243, %v244
    %v246 = vrot.slane %v245, 1
    %v247 = vadd.f32 %v245, %v246
    %s248 = vtos %v247
    %v249 = vstv %s248
    %v250 = vmul.f32 %v249, %v108
    %v251 = vsub.f32 0.0, %v250
    %252 = vset.pattern.permute.xlu0 23
    %253 = vperm.xlu0 %252, %v38
    %v254 = vpop.permute.xlu0 %253
    %v256 = vmul.f32 %v254, %v38
    %vm257 = vcmp.gt.f32.partialorder %v38, 0.0
    %v258 = vsel %vm257, %v38, 1.0
    %v259 = vmul.f32 %v258, 3.9
    %261 = vrot.lane.b32.xlu0 %v259, 7
    %v262 = vpop.permute.xlu0 %261
    %v264 = vrcp.pop %v262
    %v265 = vmul.f32 %v38, %v264
    %267 = vrot.lane.b32.xlu0 %v256, 6
    %v268 = vpop.permute.xlu0 %267
    %v270 = vsub.f32 %v265, %v268
    %v271 = vmul.f32 %v258, 1.6
    %273 = vrot.lane.b32.xlu0 %v271, 8
    %v274 = vpop.permute.xlu0 %273
    %v276 = vrcp.pop %v274
    %v277 = vmul.f32 %v38, %v276
    %v278 = vsub.f32 %v277, %v268
    %v279 = vmul.f32 %v258, 1.56
    %281 = vrot.lane.b32.xlu0 %v279, 9
    %v282 = vpop.permute.xlu0 %281
    %v284 = vrcp.pop %v282
    %v285 = vmul.f32 %v38, %v284
    %v286 = vsub.f32 %v285, %v268
    %v287 = vmul.f32 %v270, %v270
    %v288 = vmul.f32 %v278, %v278
    %290 = vrot.lane.b32.xlu0 %v288, 127
    %v291 = vpop.permute.xlu0 %290
    %v293 = vadd.f32 %v287, %v291
    %v294 = vmul.f32 %v286, %v286
    %296 = vrot.lane.b32.xlu0 %v294, 126
    %v297 = vpop.permute.xlu0 %296
    %v299 = vadd.f32 %v293, %v297
    %v300 = vrsqrt.pop %v299
    %v301 = vmul.f32 %v299, %v300
    %vm302 = vcmp.eq.f32.partialorder %v299, inf
    %v303 = vsel %vm302, %v299, %v301
    %vm304 = vcmp.eq.f32.partialorder %v299, 0.0
    %v305 = vand.u32 %v299, 2147483648
    %v306 = vsel %vm304, %v305, %v303
    %v307 = vand.u32 2147483647, %v306
    %v308 = vmin.f32 %v307, 1.0
    %v309 = vsub.f32 %v307, %v308
    %v310 = vmul.f32 %v308, 0.5
    %v311 = vmul.f32 %v310, %v308
    %v312 = vadd.f32 %v311, %v309
    %314 = vrot.lane.b32.xlu0 %v312, 98
    %v315 = vpop.permute.xlu0 %314
    %v317 = vsel %vm96, %v315, 0.0
    %318 = vadd.xlane.f32.xlu0 %v317
    %v319 = vpop.xlane.xlu0 %318
    %v320 = vrot.slane %v319, 4
    %v321 = vadd.f32 %v319, %v320
    %v322 = vrot.slane %v321, 2
    %v323 = vadd.f32 %v321, %v322
    %v324 = vrot.slane %v323, 1
    %v325 = vadd.f32 %v323, %v324
    %s326 = vtos %v325
    %v327 = vstv %s326
    %v328 = vmul.f32 %v327, %v108
    %v329 = vlaneseq
    %v330 = vand.u32 %v329, 127
    %vm331 = vcmp.lt.s32.totalorder %v330, 0
    %v332 = vsub.s32 0, %v330
    %v333 = vsel %vm331, %v332, %v330
    %v334 = vshrl.u32 %v333, 2
    %v335 = vand.u32 %v333, 3
    %v336 = vsub.s32 0, %v335
    %v337 = vsel %vm331, %v336, %v335
    %vm338 = vcmp.ne.s32.totalorder %v337, 0
    %vm339 = vcmp.lt.s32.totalorder %v337, 0
    %vm340 = vmand %vm339, %vm338
    %v341 = vadd.s32 %v337, 4
    %v342 = vsel %vm340, %v341, %v337
    %vm343 = vcmp.lt.s32.totalorder %v342, 2
    %v344 = vsel %vm343, 0.5, -0.5
    %vm345 = vcmp.lt.s32.totalorder %v330, 4
    %v346 = vsel %vm345, 0.5, -0.5
    %vm347 = vcmp.eq.s32.totalorder %v342, 0
    %vm348 = vcmp.eq.s32.totalorder %v342, 3
    %vm349 = vmor %vm347, %vm348
    %v350 = vsel %vm349, 0.5, -0.5
    %v351 = vmul.f32 %v38, 2.0
    %v352 = vadd.f32 %v351, 3.9
    %v353 = vadd.f32 %v351, 1.6
    %v354 = vadd.f32 %v351, 1.56
    %356 = vset.pattern.permute.xlu0 27
    %357 = vperm.xlu0 %356, %v352
    %v358 = vpop.permute.xlu0 %357
    %v360 = vmul.f32 %v358, %v344
    %362 = vset.pattern.permute.xlu0 29
    %363 = vperm.xlu0 %362, %v354
    %v364 = vpop.permute.xlu0 %363
    %v366 = vmul.f32 %v364, %v346
    %368 = vset.pattern.permute.xlu0 28
    %369 = vperm.xlu0 %368, %v353
    %v370 = vpop.permute.xlu0 %369
    %v372 = vmul.f32 %v370, %v350
    %373 = vrot.lane.b32.xlu0 %v38, 111
    %v374 = vpop.permute.xlu0 %373
    %v376 = vsel %vm154, %v374, 0.0
    %377 = vadd.xlane.f32.xlu0 %v376
    %v378 = vpop.xlane.xlu0 %377
    %379 = vset.pattern.permute.xlu0 33
    %380 = vperm.xlu0 %379, %v38
    %v381 = vpop.permute.xlu0 %380
    %v383 = vmul.f32 %v381, %v360
    %384 = vset.pattern.permute.xlu0 34
    %385 = vperm.xlu0 %384, %v38
    %v386 = vpop.permute.xlu0 %385
    %v388 = vmul.f32 %v386, %v372
    %v389 = vadd.f32 %v383, %v388
    %v390 = vmul.f32 %v378, %v38
    %392 = vset.pattern.permute.xlu0 0
    %393 = vperm.xlu0 %392, %v390
    %v394 = vpop.permute.xlu0 %393
    %v396 = vadd.f32 %v389, %v394
    %v397 = vmul.f32 %v254, %v396
    %398 = vset.pattern.permute.xlu0 1
    %399 = vperm.xlu0 %398, %v38
    %v400 = vpop.permute.xlu0 %399
    %v402 = vadd.f32 %v366, %v400
    %v403 = vmul.f32 %v378, %v402
    %v404 = vmul.f32 %v254, %v403
    %v405 = vsub.f32 0.0, %v38
    %407 = vset.pattern.permute.xlu0 34
    %408 = vperm.xlu0 %407, %v405
    %v409 = vpop.permute.xlu0 %408
    %v411 = vmul.f32 %v409, %v360
    %v412 = vmul.f32 %v381, %v372
    %v413 = vadd.f32 %v411, %v412
    %414 = vset.pattern.permute.xlu0 2
    %415 = vperm.xlu0 %414, %v390
    %v416 = vpop.permute.xlu0 %415
    %v418 = vadd.f32 %v413, %v416
    %v419 = vmul.f32 %v254, %v418
    %v420 = vadd.f32 %v38, 3.9
    %422 = vrot.lane.b32.xlu0 %v420, 121
    %v423 = vpop.permute.xlu0 %422
    %v425 = vmul.f32 %v38, %v423
    %v426 = vadd.f32 %v38, 1.6
    %428 = vrot.lane.b32.xlu0 %v426, 120
    %v429 = vpop.permute.xlu0 %428
    %v431 = vmul.f32 %v38, %v429
    %v432 = vadd.f32 %v38, 1.56
    %434 = vrot.lane.b32.xlu0 %v432, 119
    %v435 = vpop.permute.xlu0 %434
    %v437 = vmul.f32 %v38, %v435
    %439 = vset.pattern.permute.xlu0 23
    %440 = vperm.xlu0 %439, %v425
    %v441 = vpop.permute.xlu0 %440
    %v443 = vmul.f32 %v441, %v344
    %445 = vset.pattern.permute.xlu0 23
    %446 = vperm.xlu0 %445, %v437
    %v447 = vpop.permute.xlu0 %446
    %v449 = vmul.f32 %v447, %v346
    %451 = vset.pattern.permute.xlu0 23
    %452 = vperm.xlu0 %451, %v431
    %v453 = vpop.permute.xlu0 %452
    %v455 = vmul.f32 %v453, %v350
    %456 = vset.pattern.permute.xlu0 35
    %457 = vperm.xlu0 %456, %v38
    %v458 = vpop.permute.xlu0 %457
    %v460 = vmul.f32 %v458, %v443
    %461 = vset.pattern.permute.xlu0 36
    %462 = vperm.xlu0 %461, %v38
    %v463 = vpop.permute.xlu0 %462
    %v465 = vmul.f32 %v463, %v455
    %v466 = vadd.f32 %v460, %v465
    %467 = vset.pattern.permute.xlu0 3
    %468 = vperm.xlu0 %467, %v38
    %v469 = vpop.permute.xlu0 %468
    %v471 = vadd.f32 %v466, %v469
    %472 = vset.pattern.permute.xlu0 4
    %473 = vperm.xlu0 %472, %v38
    %v474 = vpop.permute.xlu0 %473
    %v476 = vadd.f32 %v449, %v474
    %477 = vset.pattern.permute.xlu0 36
    %478 = vperm.xlu0 %477, %v405
    %v479 = vpop.permute.xlu0 %478
    %v481 = vmul.f32 %v479, %v443
    %v482 = vmul.f32 %v458, %v455
    %v483 = vadd.f32 %v481, %v482
    %484 = vset.pattern.permute.xlu0 5
    %485 = vperm.xlu0 %484, %v38
    %v486 = vpop.permute.xlu0 %485
    %v488 = vadd.f32 %v483, %v486
    %489 = vset.pattern.permute.xlu0 35
    %490 = vperm.xlu0 %489, %v405
    %v491 = vpop.permute.xlu0 %490
    %v493 = vmul.f32 %v491, %v443
    %v494 = vsub.f32 %v493, %v465
    %v495 = vadd.f32 %v494, %v469
    %v496 = vmul.f32 %v463, %v443
    %v497 = vsub.f32 %v496, %v482
    %v498 = vadd.f32 %v497, %v486
    %v499 = vsub.f32 %v397, %v471
    %v500 = vsub.f32 %v404, %v476
    %v501 = vsub.f32 %v419, %v488
    %v502 = vsub.f32 %v397, %v495
    %v503 = vsub.f32 %v419, %v498
    %v504 = vmul.f32 %v499, %v499
    %v505 = vmul.f32 %v500, %v500
    %v506 = vadd.f32 %v504, %v505
    %v507 = vmul.f32 %v501, %v501
    %v508 = vadd.f32 %v506, %v507
    %v509 = vrsqrt.pop %v508
    %v510 = vmul.f32 %v508, %v509
    %vm511 = vcmp.eq.f32.partialorder %v508, inf
    %v512 = vsel %vm511, %v508, %v510
    %vm513 = vcmp.eq.f32.partialorder %v508, 0.0
    %v514 = vand.u32 %v508, 2147483648
    %v515 = vsel %vm513, %v514, %v512
    %v516 = vmul.f32 %v502, %v502
    %v517 = vadd.f32 %v516, %v505
    %v518 = vmul.f32 %v503, %v503
    %v519 = vadd.f32 %v517, %v518
    %v520 = vrsqrt.pop %v519
    %v521 = vmul.f32 %v519, %v520
    %vm522 = vcmp.eq.f32.partialorder %v519, inf
    %v523 = vsel %vm522, %v519, %v521
    %vm524 = vcmp.eq.f32.partialorder %v519, 0.0
    %v525 = vand.u32 %v519, 2147483648
    %v526 = vsel %vm524, %v525, %v523
    %v527 = vmin.f32 %v515, %v526
    %v528 = vand.u32 2147483647, %v527
    %v529 = vmin.f32 %v528, 1.0
    %v530 = vsub.f32 %v528, %v529
    %v531 = vmul.f32 %v529, 0.5
    %v532 = vmul.f32 %v531, %v529
    %v533 = vadd.f32 %v532, %v530
    %vm534 = vcmask 64512
    %v535 = vsel %vm534, %v533, 0.0
    %536 = vadd.xlane.f32.xlu0 %v535
    %v537 = vpop.xlane.xlu0 %536
    %v538 = vrot.slane %v537, 4
    %v539 = vadd.f32 %v537, %v538
    %v540 = vrot.slane %v539, 2
    %v541 = vadd.f32 %v539, %v540
    %v542 = vrot.slane %v541, 1
    %v543 = vadd.f32 %v541, %v542
    %s544 = vtos %v543
    %v545 = vstv %s544
    %v546 = vrcp.pop 64.0
    %v547 = vmul.f32 %v545, %v546
    %v548 = vadd.f32 %v109, %v185
    %v549 = vadd.f32 %v548, %v251
    %v550 = vmul.f32 %v221, 20.0
    %v551 = vadd.f32 %v549, %v550
    %v552 = vmul.f32 %v328, 20.0
    %v553 = vadd.f32 %v551, %v552
    %v554 = vadd.f32 %v553, %v142
    %v555 = vmul.f32 %v547, 10.0
    %v556 = vadd.f32 %v554, %v555
    %v557 = vadd.f32 %v71, %v556
    %vm558 = vcmp.eq.s32.totalorder %v330, 0
    %v559 = vsel %vm558, %v557, 0.0
    %v560 = vadd.f32 %v559, 0.0
    %vm561 = vcmp.eq.s32.totalorder %v330, 1
    %v562 = vsel %vm561, %v109, 0.0
    %v563 = vadd.f32 %v560, %v562
    %vm564 = vcmp.eq.s32.totalorder %v330, 2
    %v565 = vsel %vm564, %v185, 0.0
    %v566 = vadd.f32 %v563, %v565
    %vm567 = vcmp.eq.s32.totalorder %v330, 3
    %v568 = vsel %vm567, %v251, 0.0
    %v569 = vadd.f32 %v566, %v568
    %vm570 = vcmp.eq.s32.totalorder %v330, 4
    %v571 = vsel %vm570, %v550, 0.0
    %v572 = vadd.f32 %v569, %v571
    %vm573 = vcmp.eq.s32.totalorder %v330, 5
    %v574 = vsel %vm573, %v552, 0.0
    %v575 = vadd.f32 %v572, %v574
    %vm576 = vcmp.eq.s32.totalorder %v330, 6
    %v577 = vsel %vm576, %v552, 0.0
    %v578 = vadd.f32 %v575, %v577
    %vm579 = vcmp.eq.s32.totalorder %v330, 7
    %v580 = vsel %vm579, %v555, 0.0
    %v581 = vadd.f32 %v578, %v580
    %582 = vst [vmem:[#allocation7] sm:$0x1] %v581
    // Predicated region
    $region18: #{tpu_custom_call.1} parent=1 // pred_check
      _
    $region19: #{tpu_custom_call.1} parent=1 // pred_check_branch
      %584 = sbr.rel (0) target = $region21
    $region20: #{tpu_custom_call.1} parent=1 // pred_region
      %s586 = ssub.s32 16, 16
      %587 = vsyncadd [#allocation4], %s586
      %s589 = sshll.u32 [#allocation7], 4
      %s590 = int_to_ptr.vmem [resolvable:$true] %s589
      %592 = dma.vmem_to_hbm [thread:$0]  %s590, 16, %s2, [#allocation4]
    $region21: #{tpu_custom_call.1} parent=1 // pred_fallthru
      _
    // Predicated region
    $region22: #{tpu_custom_call.1} parent=1 // pred_check
      _
    $region23: #{tpu_custom_call.1} parent=1 // pred_check_branch
      %594 = sbr.rel (0) target = $region25
    $region24: #{tpu_custom_call.1} parent=1 // pred_region
      %595 = dma.done [#allocation4], 16
    $region25: #{tpu_custom_call.1} parent=1 // pred_fallthru
      _
    %596 = vsyncpa [#allocation3], 1
    %597 = vsyncpa [#allocation6], 1
    %598 = vsyncpa [#allocation4], 1

</llo_original>
